<compile_context>
chip_gen: v7x
topology: tpu7x:2x2x1
jax: 0.10.0
libtpu: 0.0.40
codegen_flags: <defaults>
</compile_context>

<pallas_src>
import jax
import jax.numpy as jnp
from jax.experimental import pallas as pl
from jax.experimental.pallas import tpu as pltpu


def _round_up(a: int, m: int) -> int:
    return ((a + m - 1) // m) * m


def _round_down(a: int, m: int) -> int:
    return (a // m) * m


def _regresion_ciclica_kernel(b_ref, x_ref, r_ref, phi_ref, o_ref):
    # b_ref: (1,) f32 scalar in SMEM (scalar prefetch).  x_ref: (tn, D) tile.
    x = x_ref[...].astype(jnp.float32)                   # in-kernel cast (bf16 stays bf16 on the wire)
    contrib = r_ref[...] * jnp.sin(x + phi_ref[...])     # (tn, D): one sin per element (EUP/VALU)
    acc = jnp.sum(contrib, axis=-1, keepdims=True)       # (tn, 1): masked lane reduction (XLU)
    o_ref[...] = (acc + b_ref[0]).astype(o_ref.dtype)


def regresion_ciclica(x, w_sin, b_sin, w_cos, b_cos):
    """x: (N, D); w_*: (1, D); b_*: (1, 1). Returns (N, 1) in x.dtype."""
    N, D = x.shape
    f32 = jnp.float32

    # ---- wrapper-side constant folding (weights only, tiny) ----
    ws = w_sin.astype(f32)
    wc = w_cos.astype(f32)
    r = jnp.sqrt(ws * ws + wc * wc)                      # (1, D) amplitude
    phi = jnp.arctan2(wc, ws)                            # (1, D) phase
    bias = (b_sin + b_cos).astype(f32).reshape((1,))     # (1,)  combined bias -> SMEM

    # ---- per-generation tile sizing; x is never copied or padded ----
    x_bytes = jnp.dtype(x.dtype).itemsize
    o_bytes = x_bytes
    sub = max(8, 32 // x_bytes)                          # sublane granularity: 8 f32 / 16 bf16 / 32 i8
    lanes = _round_up(D, 128)                            # VMEM lane footprint of one x row

    try:
        vmem_cap = int(pltpu.get_tpu_info().vmem_capacity_bytes)
    except Exception:
        vmem_cap = 64 * 1024 * 1024                      # conservative fallback (v7x per-core VMEM)
    vmem_limit = min((vmem_cap * 3) // 4, 96 * 1024 * 1024)   # ~96 MiB v5e/v6e, ~48 MiB v7x
    buf_budget = (vmem_limit * 3) // 4                   # double-buffered x + output live here

    # Bytes per batch row: 2 x-buffers (lane-padded) + 2 output buffers ((tn,1) pads to 128 lanes).
    per_row = 2 * lanes * x_bytes + 2 * 128 * o_bytes
    tn = max(sub, _round_down(buf_budget // per_row, sub))
    tn_cap = _round_down(N, sub) if N >= sub else sub    # keep the block within the array when possible
    tn = min(tn, tn_cap)
    num_tiles = pl.cdiv(N, tn)                           # remainder rows -> partial final block

    def call(dim_sem):
        return pl.pallas_call(
            _regresion_ciclica_kernel,
            out_shape=jax.ShapeDtypeStruct((N, 1), x.dtype),
            grid_spec=pltpu.PrefetchScalarGridSpec(
                num_scalar_prefetch=1,
                grid=(num_tiles,),
                in_specs=[
                    pl.BlockSpec((tn, D), lambda i, b: (i, 0)),   # x tile (pipelined, native dtype)
                    pl.BlockSpec((1, D), lambda i, b: (0, 0)),    # R   (resident weights)
                    pl.BlockSpec((1, D), lambda i, b: (0, 0)),    # phi (resident weights)
                ],
                out_specs=pl.BlockSpec((tn, 1), lambda i, b: (i, 0)),
            ),
            compiler_params=pltpu.CompilerParams(
                dimension_semantics=dim_sem,
                vmem_limit_bytes=int(vmem_limit),
            ),
        )(bias, x, r, phi)

    core_parallel = getattr(pltpu, "CORE_PARALLEL", "parallel")
    try:
        # v7x: shard the independent batch grid axis across both TensorCores.
        return call((core_parallel,))
    except Exception:
        # Older runtimes / single-core chips that reject CORE_PARALLEL.
        return call(("parallel",))


def _reference(x, w_sin, b_sin, w_cos, b_cos):
    sin_out = jnp.sin(x) @ w_sin.T + b_sin   # (N, 1)
    cos_out = jnp.cos(x) @ w_cos.T + b_cos   # (N, 1)
    return sin_out + cos_out


if __name__ == "__main__":
    key = jax.random.PRNGKey(0)

    def make_inputs(k, N, D):
        kx, kws, kbs, kwc, kbc = jax.random.split(k, 5)
        bound = 1.0 / jnp.sqrt(jnp.float32(D))
        x = jax.random.normal(kx, (N, D), dtype=jnp.float32)
        w_sin = jax.random.uniform(kws, (1, D), jnp.float32, -bound, bound)
        b_sin = jax.random.uniform(kbs, (1, 1), jnp.float32, -bound, bound)
        w_cos = jax.random.uniform(kwc, (1, D), jnp.float32, -bound, bound)
        b_cos = jax.random.uniform(kbc, (1, 1), jnp.float32, -bound, bound)
        return x, w_sin, b_sin, w_cos, b_cos

    # Small shape consistent with the module (batch=8, input_dim=32).
    k1, k2 = jax.random.split(key)
    args = make_inputs(k1, 8, 32)
    out = jax.block_until_ready(regresion_ciclica(*args))
    ref = _reference(*args)
    assert out.shape == (8, 1)
    assert jnp.allclose(out, ref, atol=1e-4, rtol=1e-4), "mismatch vs JAX reference"

    # Exercise the partial-block / unaligned-feature path (N, D not multiples of 8 / 128).
    args2 = make_inputs(k2, 300, 200)
    out2 = jax.block_until_ready(regresion_ciclica(*args2))
    ref2 = _reference(*args2)
    assert out2.shape == (300, 1)
    assert jnp.allclose(out2, ref2, atol=1e-4, rtol=1e-4), "mismatch vs JAX reference (tiled)"

    print("KERNEL_OK")
</pallas_src>

<mosaic_0001>
module attributes {stable_mosaic.version = 11 : i64} {
  func.func @_regresion_ciclica_kernel(%arg0: i32, %arg1: memref<1xf32, #tpu.memory_space<smem>>, %arg2: memref<8x32xf32, #tpu.memory_space<vmem>>, %arg3: memref<1x32xf32, #tpu.memory_space<vmem>>, %arg4: memref<1x32xf32, #tpu.memory_space<vmem>>, %arg5: memref<8x1xf32, #tpu.memory_space<vmem>>) attributes {dimension_semantics = [#tpu.dimension_semantics<core_parallel>], iteration_bounds = array<i64: 1>, scalar_prefetch = 1 : i64, scratch_operands = 0 : i64, tpu.core_type = #tpu.core_type<tc>, window_params = [{transform_indices = @transform_0, window_bounds = array<i64: 8, 32>}, {pipeline_mode = #tpu.pipeline_mode<synchronous>, transform_indices = @transform_1, window_bounds = array<i64: 1, 32>}, {pipeline_mode = #tpu.pipeline_mode<synchronous>, transform_indices = @transform_2, window_bounds = array<i64: 1, 32>}, {transform_indices = @transform_3, window_bounds = array<i64: 8, 1>}]} {
    %c0 = arith.constant 0 : index
    %c0_0 = arith.constant 0 : index
    %0 = vector.load %arg2[%c0, %c0_0] : memref<8x32xf32, #tpu.memory_space<vmem>>, vector<8x32xf32>
    %c0_1 = arith.constant 0 : index
    %c0_2 = arith.constant 0 : index
    %1 = vector.load %arg3[%c0_1, %c0_2] : memref<1x32xf32, #tpu.memory_space<vmem>>, vector<1x32xf32>
    %c0_3 = arith.constant 0 : index
    %c0_4 = arith.constant 0 : index
    %2 = vector.load %arg4[%c0_3, %c0_4] : memref<1x32xf32, #tpu.memory_space<vmem>>, vector<1x32xf32>
    %3 = vector.broadcast %2 : vector<1x32xf32> to vector<8x32xf32>
    %4 = arith.addf %0, %3 : vector<8x32xf32>
    %5 = math.sin %4 : vector<8x32xf32>
    %6 = vector.broadcast %1 : vector<1x32xf32> to vector<8x32xf32>
    %7 = arith.mulf %6, %5 : vector<8x32xf32>
    %cst = arith.constant dense<0.000000e+00> : vector<8xf32>
    %8 = vector.multi_reduction <add>, %7, %cst [1] : vector<8x32xf32> to vector<8xf32>
    %9 = vector.shape_cast %8 : vector<8xf32> to vector<8x1xf32>
    %c0_5 = arith.constant 0 : index
    %10 = memref.load %arg1[%c0_5] : memref<1xf32, #tpu.memory_space<smem>>
    %11 = vector.broadcast %10 : f32 to vector<8x1xf32>
    %12 = arith.addf %9, %11 : vector<8x1xf32>
    %c0_6 = arith.constant 0 : index
    %c0_7 = arith.constant 0 : index
    %13 = vector.load %arg5[%c0_6, %c0_7] : memref<8x1xf32, #tpu.memory_space<vmem>>, vector<8x1xf32>
    tpu.vector_store %arg5[%c0_6, %c0_7], %12 {strides = array<i32>} : memref<8x1xf32, #tpu.memory_space<vmem>>, vector<8x1xf32>,
    return
  }
  func.func @transform_0(%arg0: i32, %arg1: memref<1xf32, #tpu.memory_space<smem>>) -> (i32, i32) {
    %c0_i32 = arith.constant 0 : i32
    %c0_i32_0 = arith.constant 0 : i32
    return %arg0, %c0_i32 : i32, i32
  }
  func.func @transform_1(%arg0: i32, %arg1: memref<1xf32, #tpu.memory_space<smem>>) -> (i32, i32) {
    %c0_i32 = arith.constant 0 : i32
    %c0_i32_0 = arith.constant 0 : i32
    %c0_i32_1 = arith.constant 0 : i32
    return %c0_i32, %c0_i32_0 : i32, i32
  }
  func.func @transform_2(%arg0: i32, %arg1: memref<1xf32, #tpu.memory_space<smem>>) -> (i32, i32) {
    %c0_i32 = arith.constant 0 : i32
    %c0_i32_0 = arith.constant 0 : i32
    %c0_i32_1 = arith.constant 0 : i32
    return %c0_i32, %c0_i32_0 : i32, i32
  }
  func.func @transform_3(%arg0: i32, %arg1: memref<1xf32, #tpu.memory_space<smem>>) -> (i32, i32) {
    %c0_i32 = arith.constant 0 : i32
    %c0_i32_0 = arith.constant 0 : i32
    return %arg0, %c0_i32 : i32, i32
  }
}

module attributes {stable_mosaic.version = 11 : i64} {
  func.func @_regresion_ciclica_kernel(%arg0: i32, %arg1: memref<1xf32, #tpu.memory_space<smem>>, %arg2: memref<8x32xf32, #tpu.memory_space<vmem>>, %arg3: memref<1x32xf32, #tpu.memory_space<vmem>>, %arg4: memref<1x32xf32, #tpu.memory_space<vmem>>, %arg5: memref<8x1xf32, #tpu.memory_space<vmem>>) attributes {dimension_semantics = [#tpu.dimension_semantics<parallel>], iteration_bounds = array<i64: 1>, scalar_prefetch = 1 : i64, scratch_operands = 0 : i64, tpu.core_type = #tpu.core_type<tc>, window_params = [{transform_indices = @transform_0, window_bounds = array<i64: 8, 32>}, {pipeline_mode = #tpu.pipeline_mode<synchronous>, transform_indices = @transform_1, window_bounds = array<i64: 1, 32>}, {pipeline_mode = #tpu.pipeline_mode<synchronous>, transform_indices = @transform_2, window_bounds = array<i64: 1, 32>}, {transform_indices = @transform_3, window_bounds = array<i64: 8, 1>}]} {
    %c0 = arith.constant 0 : index
    %c0_0 = arith.constant 0 : index
    %0 = vector.load %arg2[%c0, %c0_0] : memref<8x32xf32, #tpu.memory_space<vmem>>, vector<8x32xf32>
    %c0_1 = arith.constant 0 : index
    %c0_2 = arith.constant 0 : index
    %1 = vector.load %arg3[%c0_1, %c0_2] : memref<1x32xf32, #tpu.memory_space<vmem>>, vector<1x32xf32>
    %c0_3 = arith.constant 0 : index
    %c0_4 = arith.constant 0 : index
    %2 = vector.load %arg4[%c0_3, %c0_4] : memref<1x32xf32, #tpu.memory_space<vmem>>, vector<1x32xf32>
    %3 = vector.broadcast %2 : vector<1x32xf32> to vector<8x32xf32>
    %4 = arith.addf %0, %3 : vector<8x32xf32>
    %5 = math.sin %4 : vector<8x32xf32>
    %6 = vector.broadcast %1 : vector<1x32xf32> to vector<8x32xf32>
    %7 = arith.mulf %6, %5 : vector<8x32xf32>
    %cst = arith.constant dense<0.000000e+00> : vector<8xf32>
    %8 = vector.multi_reduction <add>, %7, %cst [1] : vector<8x32xf32> to vector<8xf32>
    %9 = vector.shape_cast %8 : vector<8xf32> to vector<8x1xf32>
    %c0_5 = arith.constant 0 : index
    %10 = memref.load %arg1[%c0_5] : memref<1xf32, #tpu.memory_space<smem>>
    %11 = vector.broadcast %10 : f32 to vector<8x1xf32>
    %12 = arith.addf %9, %11 : vector<8x1xf32>
    %c0_6 = arith.constant 0 : index
    %c0_7 = arith.constant 0 : index
    %13 = vector.load %arg5[%c0_6, %c0_7] : memref<8x1xf32, #tpu.memory_space<vmem>>, vector<8x1xf32>
    tpu.vector_store %arg5[%c0_6, %c0_7], %12 {strides = array<i32>} : memref<8x1xf32, #tpu.memory_space<vmem>>, vector<8x1xf32>,
    return
  }
  func.func @transform_0(%arg0: i32, %arg1: memref<1xf32, #tpu.memory_space<smem>>) -> (i32, i32) {
    %c0_i32 = arith.constant 0 : i32
    %c0_i32_0 = arith.constant 0 : i32
    return %arg0, %c0_i32 : i32, i32
  }
  func.func @transform_1(%arg0: i32, %arg1: memref<1xf32, #tpu.memory_space<smem>>) -> (i32, i32) {
    %c0_i32 = arith.constant 0 : i32
    %c0_i32_0 = arith.constant 0 : i32
    %c0_i32_1 = arith.constant 0 : i32
    return %c0_i32, %c0_i32_0 : i32, i32
  }
  func.func @transform_2(%arg0: i32, %arg1: memref<1xf32, #tpu.memory_space<smem>>) -> (i32, i32) {
    %c0_i32 = arith.constant 0 : i32
    %c0_i32_0 = arith.constant 0 : i32
    %c0_i32_1 = arith.constant 0 : i32
    return %c0_i32, %c0_i32_0 : i32, i32
  }
  func.func @transform_3(%arg0: i32, %arg1: memref<1xf32, #tpu.memory_space<smem>>) -> (i32, i32) {
    %c0_i32 = arith.constant 0 : i32
    %c0_i32_0 = arith.constant 0 : i32
    return %arg0, %c0_i32 : i32, i32
  }
}

</mosaic_0001>

<llo_original>
// kernel: tpu_custom_call.1
$region0: #{tpu_custom_call.1}
  #allocation0 [shape = 'u32[]', space=smem, size = 0x4, offset = 0x4, fixed_abs, tag = 'smem constant byte address 0x4 - core index']
  #allocation1 [shape = 'u32[144,128]{1,0:T(1,128)}', space=vmem, size = 0x12000, scoped, tag = 'internal scratch']
  #allocation2 [shape = 's32[1]{0}', space=sflag, size = 0x4, scoped, tag = 'scoped memory for tpu_custom_call.1']
  #allocation3 [shape = 'f32[1]{0:T(128)S(6)}', space=smem, size = 0x200, scoped, tag = 'prefetched SMEM operand 0']
  %s0 = inlined_call_operand.<no memory space> [shape: f32[1], index: 0, kind: input, shape index: {}]
  %s1 = inlined_call_operand.hbm [shape: f32[8,32], index: 1, kind: input, shape index: {}]
  %s2 = inlined_call_operand.vmem [shape: f32[1,32], index: 2, kind: input, shape index: {}]
  %s3 = inlined_call_operand.vmem [shape: f32[1,32], index: 3, kind: input, shape index: {}]
  %s4 = inlined_call_operand.vmem [shape: f32[8,1], index: 4, kind: output, shape index: {}]
  %s5 = sld [smem:[#allocation0]]
  $region26: #{tpu_custom_call.1} parent=0
    _
  %s7 = ssub.s32 1, %s5
  %s8 = scalar_select 0, %s7, %s5
  %9 = sst [smem:[#allocation3]] %s0
  $region1: #{tpu_custom_call.1} parent=0
    #allocation4 [shape = 'u8[4096]{0}', space=vmem, size = 0x1000, scoped, tag = 'input window, operand 1, single buffered']
    #allocation5 [shape = 's32[1]{0}', space=sflag, size = 0x4, scoped, tag = 'scoped memory for tpu_custom_call.1']
    %10 = vsyncpa [#allocation5], 0
    // Predicated region
    $region2: #{tpu_custom_call.1} parent=1 // pred_check
      _
    $region3: #{tpu_custom_call.1} parent=1 // pred_check_branch
      %12 = sbr.rel (0) target = $region5
    $region4: #{tpu_custom_call.1} parent=1 // pred_region
      %s14 = ssub.s32 128, 128
      %15 = vsyncadd [#allocation5], %s14
      %s16 = smul.addr %s8, 128
      %s17 = scalar_lea.hbm %s1, %s16
      %s19 = sshll.u32 [#allocation4], 4
      %s20 = int_to_ptr.vmem [resolvable:$true] %s19
      %22 = dma.hbm_to_vmem [thread:$0]  %s17, 128, %s20, [#allocation5]
    $region5: #{tpu_custom_call.1} parent=1 // pred_fallthru
      _
    // Predicated region
    $region6: #{tpu_custom_call.1} parent=1 // pred_check
      _
    $region7: #{tpu_custom_call.1} parent=1 // pred_check_branch
      %24 = sbr.rel (0) target = $region9
    $region8: #{tpu_custom_call.1} parent=1 // pred_region
      _
    $region9: #{tpu_custom_call.1} parent=1 // pred_fallthru
      _
    // Predicated region
    $region10: #{tpu_custom_call.1} parent=1 // pred_check
      _
    $region11: #{tpu_custom_call.1} parent=1 // pred_check_branch
      %26 = sbr.rel (0) target = $region13
    $region12: #{tpu_custom_call.1} parent=1 // pred_region
      _
    $region13: #{tpu_custom_call.1} parent=1 // pred_fallthru
      _
    // Predicated region
    $region14: #{tpu_custom_call.1} parent=1 // pred_check
      _
    $region15: #{tpu_custom_call.1} parent=1 // pred_check_branch
      %28 = sbr.rel (0) target = $region17
    $region16: #{tpu_custom_call.1} parent=1 // pred_region
      %29 = dma.done [#allocation5], 128
    $region17: #{tpu_custom_call.1} parent=1 // pred_fallthru
      _
    %p30 = scmp.lt.s32.totalorder %s8, 0
    %s31 = scalar_select %p30, %s8, 0
    %s32 = smul.addr %s31, 8
    %s33 = scalar_lea.vmem %s4, %s32
    %p34 = scmp.lt.s32.totalorder %s8, 0
    %s35 = scalar_select %p34, %s8, 0
    %s36 = smul.addr %s35, 8
    %s37 = scalar_lea.vmem %s4, %s36
    %v38 = vld [vmem:[#allocation4] sm:$0xff]
    %v39 = vld [vmem:[%s2] sm:$0x1]
    %v40 = vld [vmem:[%s3] sm:$0x1]
    %v42 = vlaneseq
    %v43 = vshrl.u32 %v42, 7
    %v44 = vsub.s32 0, %v43
    %v45 = vrot.slane %v40, %v44
    %v47 = vadd.f32 %v38, %v45
    %v48 = vand.u32 2147483647, %v47
    %vm49 = vcmp.le.f32.partialorder %v48, 0.7853982
    %vm50 = vcmp.lt.s32.totalorder %v47, 0
    %v51 = vand.u32 %v47, 2139095040
    %v52 = vshrl.u32 %v51, 23
    %v53 = vsub.s32 %v52, 127
    %v54 = vand.u32 2147483647, %v47
    %v55 = vand.u32 %v54, 8388607
    %v56 = vor.u32 %v55, 8388608
    %v57 = vsub.s32 0, %v56
    %v58 = vadd.s32 %v53, 1
    %vm59 = vcmp.gt.s32.totalorder %v58, 0
    %v60 = vsel %vm59, %v58, 0
    %v61 = vshrl.u32 %v60, 5
    %v62 = vand.u32 %v60, 31
    %v63 = vsub.s32 32, %v62
    %v64 = vshrl.u32 683565275, %v63
    %v65 = vshll.u32 683565275, %v62
    %v66 = vshrl.u32 2475754826, %v63
    %v67 = vor.u32 %v65, %v66
    %v68 = vshll.u32 2475754826, %v62
    %v69 = vshrl.u32 2131351028, %v63
    %v70 = vor.u32 %v68, %v69
    %v71 = vshll.u32 2131351028, %v62
    %v72 = vshrl.u32 2102212464, %v63
    %v73 = vor.u32 %v71, %v72
    %v74 = vshll.u32 2102212464, %v62
    %v75 = vshrl.u32 920167782, %v63
    %v76 = vor.u32 %v74, %v75
    %v77 = vshll.u32 920167782, %v62
    %v78 = vshrl.u32 1326507024, %v63
    %v79 = vor.u32 %v77, %v78
    %vm80 = vcmp.lt.s32.totalorder %v61, 1
    %vm81 = vcmp.lt.s32.totalorder %v61, 2
    %vm82 = vcmp.lt.s32.totalorder %v61, 3
    %vm83 = vcmp.lt.s32.totalorder %v61, 4
    %v84 = vsel %vm80, %v64, %v67
    %v85 = vsel %vm83, %v73, 2102212464
    %v86 = vsel %vm82, %v70, %v85
    %v87 = vsel %vm81, %v84, %v86
    %v88 = vsel %vm80, %v67, %v70
    %v89 = vsel %vm83, %v76, 920167782
    %v90 = vsel %vm82, %v73, %v89
    %v91 = vsel %vm81, %v88, %v90
    %v92 = vsel %vm80, %v70, %v73
    %v93 = vsel %vm83, %v79, 1326507024
    %v94 = vsel %vm82, %v76, %v93
    %v95 = vsel %vm81, %v92, %v94
    %v96 = vshll.u32 %v56, 8
    %v97 = vmul.u32.u64.compose %v96, %v95
    %v98 = vextract.low.u32 %v97
    %v99 = vextract.high.u32 %v97
    %v100 = vmul.u32.u64.compose %v96, %v91
    %v101 = vextract.low.u32 %v100
    %v102 = vextract.high.u32 %v100
    %v103 = vmul.u32 %v96, %v87
    %v104 = vadd.s32 %v99, %v101
    %vm105 = vc.u32 %v99, %v101
    %v106 = vadd.s32 %v102, 1
    %v107 = vsel %vm105, %v106, %v102
    %v108 = vadd.s32 %v103, %v107
    %v109 = vadd.s32 %v108, 536870912
    %v110 = vshrl.u32 %v109, 30
    %v111 = vshll.u32 %v110, 30
    %v112 = vsub.s32 %v108, %v111
    %vm113 = vcmp.lt.s32.totalorder %v112, 0
    %v114 = vsub.s32 0, %v112
    %v115 = vsel %vm113, %v114, %v112
    %v116 = vclz %v115
    %v117 = vsub.s32 %v116, 2
    %vm118 = vcmp.gt.s32.totalorder 0, %v117
    %v119 = vsel %vm118, 0, %v117
    %v120 = vsub.s32 32, %v119
    %v121 = vshll.u32 %v112, %v119
    %v122 = vshrl.u32 %v104, %v120
    %v123 = vor.u32 %v121, %v122
    %v124 = vsub.s32 4294967266, %v119
    %v125 = vadd.s32 %v124, 127
    %v126 = vshll.u32 %v125, 23
    %v127 = vor.u32 4788187, %v126
    %v128 = vand.u32 2147483647, %v127
    %v130 = vcvt.s32.f32 %v123
    %v131 = vmul.f32 %v130, %v128
    %v132 = vxor.u32 %v131, 2147483648
    %v133 = vsel %vm50, %v132, %v131
    %v134 = vsub.s32 4, %v110
    %v135 = vsel %vm50, %v134, %v110
    %v136 = vsel %vm49, %v47, %v133
    %v137 = vsel %vm49, 0, %v135
    %v138 = vcosq.f32.pop %v136
    %v139 = vsinq.f32.pop %v136
    %vm140 = vweird.f32 %v47
    %v141 = vadd.s32 %v137, 3
    %v142 = vand.u32 %v141, 3
    %vm143 = vcmp.lt.s32.totalorder %v142, 2
    %vm144 = vcmp.eq.s32.totalorder %v142, 0
    %v145 = vxor.u32 %v139, 2147483648
    %v146 = vsel %vm144, %v138, %v145
    %vm147 = vcmp.eq.s32.totalorder %v142, 2
    %v148 = vxor.u32 %v138, 2147483648
    %v149 = vsel %vm147, %v148, %v139
    %v150 = vsel %vm143, %v146, %v149
    %v151 = vsel %vm140, nan, %v150
    %v153 = vlaneseq
    %v154 = vshrl.u32 %v153, 7
    %v155 = vsub.s32 0, %v154
    %v156 = vrot.slane %v39, %v155
    %v158 = vmul.f32 %v156, %v151
    %vm159 = vcmask 261120
    %v160 = vsel %vm159, %v158, 0.0
    %161 = vadd.xlane.f32.xlu0 %v160
    %v162 = vpop.xlane.xlu0 %161
    %s163 = sld [smem:[#allocation3]]
    %v164 = vstv %s163
    %v165 = vadd.f32 %v162, %v164
    %vm166 = vcmask 7168
    %167 = vst.msk [vmem:[%s37] sm:$0xff] %vm166, %v165
    %p168 = scmp.lt.s32.totalorder %s8, 0
    %s169 = scalar_select %p168, %s8, 0
    %s170 = smul.addr %s169, 8
    %s171 = scalar_lea.vmem %s4, %s170
    // Predicated region
    $region18: #{tpu_custom_call.1} parent=1 // pred_check
      _
    $region19: #{tpu_custom_call.1} parent=1 // pred_check_branch
      %173 = sbr.rel (0) target = $region21
    $region20: #{tpu_custom_call.1} parent=1 // pred_region
      _
    $region21: #{tpu_custom_call.1} parent=1 // pred_fallthru
      _
    // Predicated region
    $region22: #{tpu_custom_call.1} parent=1 // pred_check
      _
    $region23: #{tpu_custom_call.1} parent=1 // pred_check_branch
      %175 = sbr.rel (0) target = $region25
    $region24: #{tpu_custom_call.1} parent=1 // pred_region
      %p176 = scmp.lt.s32.totalorder %s8, 0
      %s177 = scalar_select %p176, %s8, 0
      %s178 = smul.addr %s177, 8
      %s179 = scalar_lea.vmem %s4, %s178
    $region25: #{tpu_custom_call.1} parent=1 // pred_fallthru
      _
    %180 = vsyncpa [#allocation5], 1

// kernel: tpu_custom_call.1
$region0: #{tpu_custom_call.1}
  #allocation0 [shape = 'u32[]', space=smem, size = 0x4, offset = 0x4, fixed_abs, tag = 'smem constant byte address 0x4 - core index']
  #allocation1 [shape = 'u32[144,128]{1,0:T(1,128)}', space=vmem, size = 0x12000, scoped, tag = 'internal scratch']
  #allocation2 [shape = 's32[1]{0}', space=sflag, size = 0x4, scoped, tag = 'scoped memory for tpu_custom_call.1']
  #allocation3 [shape = 'f32[1]{0:T(128)S(6)}', space=smem, size = 0x200, scoped, tag = 'prefetched SMEM operand 0']
  %s0 = inlined_call_operand.<no memory space> [shape: f32[1], index: 0, kind: input, shape index: {}]
  %s1 = inlined_call_operand.hbm [shape: f32[8,32], index: 1, kind: input, shape index: {}]
  %s2 = inlined_call_operand.vmem [shape: f32[1,32], index: 2, kind: input, shape index: {}]
  %s3 = inlined_call_operand.vmem [shape: f32[1,32], index: 3, kind: input, shape index: {}]
  %s4 = inlined_call_operand.vmem [shape: f32[8,1], index: 4, kind: output, shape index: {}]
  %s5 = sld [smem:[#allocation0]]
  $region26: #{tpu_custom_call.1} parent=0
    _
  %s7 = ssub.s32 1, %s5
  %s8 = scalar_select 0, %s7, %s5
  %9 = sst [smem:[#allocation3]] %s0
  $region1: #{tpu_custom_call.1} parent=0
    #allocation4 [shape = 'u8[4096]{0}', space=vmem, size = 0x1000, scoped, tag = 'input window, operand 1, single buffered']
    #allocation5 [shape = 's32[1]{0}', space=sflag, size = 0x4, scoped, tag = 'scoped memory for tpu_custom_call.1']
    %10 = vsyncpa [#allocation5], 0
    // Predicated region
    $region2: #{tpu_custom_call.1} parent=1 // pred_check
      _
    $region3: #{tpu_custom_call.1} parent=1 // pred_check_branch
      %12 = sbr.rel (0) target = $region5
    $region4: #{tpu_custom_call.1} parent=1 // pred_region
      %s14 = ssub.s32 128, 128
      %15 = vsyncadd [#allocation5], %s14
      %s17 = sshll.u32 [#allocation4], 4
      %s18 = int_to_ptr.vmem [resolvable:$true] %s17
      %20 = dma.hbm_to_vmem [thread:$0]  %s1, 128, %s18, [#allocation5]
    $region5: #{tpu_custom_call.1} parent=1 // pred_fallthru
      _
    // Predicated region
    $region6: #{tpu_custom_call.1} parent=1 // pred_check
      _
    $region7: #{tpu_custom_call.1} parent=1 // pred_check_branch
      %22 = sbr.rel (0) target = $region9
    $region8: #{tpu_custom_call.1} parent=1 // pred_region
      _
    $region9: #{tpu_custom_call.1} parent=1 // pred_fallthru
      _
    // Predicated region
    $region10: #{tpu_custom_call.1} parent=1 // pred_check
      _
    $region11: #{tpu_custom_call.1} parent=1 // pred_check_branch
      %24 = sbr.rel (0) target = $region13
    $region12: #{tpu_custom_call.1} parent=1 // pred_region
      _
    $region13: #{tpu_custom_call.1} parent=1 // pred_fallthru
      _
    // Predicated region
    $region14: #{tpu_custom_call.1} parent=1 // pred_check
      _
    $region15: #{tpu_custom_call.1} parent=1 // pred_check_branch
      %26 = sbr.rel (0) target = $region17
    $region16: #{tpu_custom_call.1} parent=1 // pred_region
      %27 = dma.done [#allocation5], 128
    $region17: #{tpu_custom_call.1} parent=1 // pred_fallthru
      _
    %v28 = vld [vmem:[#allocation4] sm:$0xff]
    %v29 = vld [vmem:[%s2] sm:$0x1]
    %v30 = vld [vmem:[%s3] sm:$0x1]
    %v32 = vlaneseq
    %v33 = vshrl.u32 %v32, 7
    %v34 = vsub.s32 0, %v33
    %v35 = vrot.slane %v30, %v34
    %v37 = vadd.f32 %v28, %v35
    %v38 = vand.u32 2147483647, %v37
    %vm39 = vcmp.le.f32.partialorder %v38, 0.7853982
    %vm40 = vcmp.lt.s32.totalorder %v37, 0
    %v41 = vand.u32 %v37, 2139095040
    %v42 = vshrl.u32 %v41, 23
    %v43 = vsub.s32 %v42, 127
    %v44 = vand.u32 2147483647, %v37
    %v45 = vand.u32 %v44, 8388607
    %v46 = vor.u32 %v45, 8388608
    %v47 = vsub.s32 0, %v46
    %v48 = vadd.s32 %v43, 1
    %vm49 = vcmp.gt.s32.totalorder %v48, 0
    %v50 = vsel %vm49, %v48, 0
    %v51 = vshrl.u32 %v50, 5
    %v52 = vand.u32 %v50, 31
    %v53 = vsub.s32 32, %v52
    %v54 = vshrl.u32 683565275, %v53
    %v55 = vshll.u32 683565275, %v52
    %v56 = vshrl.u32 2475754826, %v53
    %v57 = vor.u32 %v55, %v56
    %v58 = vshll.u32 2475754826, %v52
    %v59 = vshrl.u32 2131351028, %v53
    %v60 = vor.u32 %v58, %v59
    %v61 = vshll.u32 2131351028, %v52
    %v62 = vshrl.u32 2102212464, %v53
    %v63 = vor.u32 %v61, %v62
    %v64 = vshll.u32 2102212464, %v52
    %v65 = vshrl.u32 920167782, %v53
    %v66 = vor.u32 %v64, %v65
    %v67 = vshll.u32 920167782, %v52
    %v68 = vshrl.u32 1326507024, %v53
    %v69 = vor.u32 %v67, %v68
    %vm70 = vcmp.lt.s32.totalorder %v51, 1
    %vm71 = vcmp.lt.s32.totalorder %v51, 2
    %vm72 = vcmp.lt.s32.totalorder %v51, 3
    %vm73 = vcmp.lt.s32.totalorder %v51, 4
    %v74 = vsel %vm70, %v54, %v57
    %v75 = vsel %vm73, %v63, 2102212464
    %v76 = vsel %vm72, %v60, %v75
    %v77 = vsel %vm71, %v74, %v76
    %v78 = vsel %vm70, %v57, %v60
    %v79 = vsel %vm73, %v66, 920167782
    %v80 = vsel %vm72, %v63, %v79
    %v81 = vsel %vm71, %v78, %v80
    %v82 = vsel %vm70, %v60, %v63
    %v83 = vsel %vm73, %v69, 1326507024
    %v84 = vsel %vm72, %v66, %v83
    %v85 = vsel %vm71, %v82, %v84
    %v86 = vshll.u32 %v46, 8
    %v87 = vmul.u32.u64.compose %v86, %v85
    %v88 = vextract.low.u32 %v87
    %v89 = vextract.high.u32 %v87
    %v90 = vmul.u32.u64.compose %v86, %v81
    %v91 = vextract.low.u32 %v90
    %v92 = vextract.high.u32 %v90
    %v93 = vmul.u32 %v86, %v77
    %v94 = vadd.s32 %v89, %v91
    %vm95 = vc.u32 %v89, %v91
    %v96 = vadd.s32 %v92, 1
    %v97 = vsel %vm95, %v96, %v92
    %v98 = vadd.s32 %v93, %v97
    %v99 = vadd.s32 %v98, 536870912
    %v100 = vshrl.u32 %v99, 30
    %v101 = vshll.u32 %v100, 30
    %v102 = vsub.s32 %v98, %v101
    %vm103 = vcmp.lt.s32.totalorder %v102, 0
    %v104 = vsub.s32 0, %v102
    %v105 = vsel %vm103, %v104, %v102
    %v106 = vclz %v105
    %v107 = vsub.s32 %v106, 2
    %vm108 = vcmp.gt.s32.totalorder 0, %v107
    %v109 = vsel %vm108, 0, %v107
    %v110 = vsub.s32 32, %v109
    %v111 = vshll.u32 %v102, %v109
    %v112 = vshrl.u32 %v94, %v110
    %v113 = vor.u32 %v111, %v112
    %v114 = vsub.s32 4294967266, %v109
    %v115 = vadd.s32 %v114, 127
    %v116 = vshll.u32 %v115, 23
    %v117 = vor.u32 4788187, %v116
    %v118 = vand.u32 2147483647, %v117
    %v120 = vcvt.s32.f32 %v113
    %v121 = vmul.f32 %v120, %v118
    %v122 = vxor.u32 %v121, 2147483648
    %v123 = vsel %vm40, %v122, %v121
    %v124 = vsub.s32 4, %v100
    %v125 = vsel %vm40, %v124, %v100
    %v126 = vsel %vm39, %v37, %v123
    %v127 = vsel %vm39, 0, %v125
    %v128 = vcosq.f32.pop %v126
    %v129 = vsinq.f32.pop %v126
    %vm130 = vweird.f32 %v37
    %v131 = vadd.s32 %v127, 3
    %v132 = vand.u32 %v131, 3
    %vm133 = vcmp.lt.s32.totalorder %v132, 2
    %vm134 = vcmp.eq.s32.totalorder %v132, 0
    %v135 = vxor.u32 %v129, 2147483648
    %v136 = vsel %vm134, %v128, %v135
    %vm137 = vcmp.eq.s32.totalorder %v132, 2
    %v138 = vxor.u32 %v128, 2147483648
    %v139 = vsel %vm137, %v138, %v129
    %v140 = vsel %vm133, %v136, %v139
    %v141 = vsel %vm130, nan, %v140
    %v143 = vlaneseq
    %v144 = vshrl.u32 %v143, 7
    %v145 = vsub.s32 0, %v144
    %v146 = vrot.slane %v29, %v145
    %v148 = vmul.f32 %v146, %v141
    %vm149 = vcmask 261120
    %v150 = vsel %vm149, %v148, 0.0
    %151 = vadd.xlane.f32.xlu0 %v150
    %v152 = vpop.xlane.xlu0 %151
    %s153 = sld [smem:[#allocation3]]
    %v154 = vstv %s153
    %v155 = vadd.f32 %v152, %v154
    %vm156 = vcmask 7168
    %157 = vst.msk [vmem:[%s4] sm:$0xff] %vm156, %v155
    // Predicated region
    $region18: #{tpu_custom_call.1} parent=1 // pred_check
      _
    $region19: #{tpu_custom_call.1} parent=1 // pred_check_branch
      %159 = sbr.rel (0) target = $region21
    $region20: #{tpu_custom_call.1} parent=1 // pred_region
      _
    $region21: #{tpu_custom_call.1} parent=1 // pred_fallthru
      _
    // Predicated region
    $region22: #{tpu_custom_call.1} parent=1 // pred_check
      _
    $region23: #{tpu_custom_call.1} parent=1 // pred_check_branch
      %161 = sbr.rel (0) target = $region25
    $region24: #{tpu_custom_call.1} parent=1 // pred_region
      _
    $region25: #{tpu_custom_call.1} parent=1 // pred_fallthru
      _
    %162 = vsyncpa [#allocation5], 1

</llo_original>
